<compile_context>
chip_gen: v7x
topology: tpu7x:2x2x1
jax: 0.10.0
libtpu: 0.0.40
codegen_flags: <defaults>
</compile_context>

<pallas_src>
import functools

import jax
import jax.numpy as jnp
from jax.experimental import pallas as pl
from jax.experimental.pallas import tpu as pltpu

HID = 64
N_HIDDEN_LAYERS = 4
IN_DIM = 2
OUT_DIM = 3
TOTAL_PARAMS = (IN_DIM * HID + HID) + N_HIDDEN_LAYERS * (HID * HID + HID) + (
    HID * OUT_DIM + OUT_DIM)  # 17027


def _mlp_kernel(x_ref, small_ref, wh_ref, wo_ref, out_ref, *, chunk, num_chunks):
    """One grid step: process `num_chunks` lane-chunks of `chunk` columns each.

    small_ref is the merged [64, 8] operand:
      col 0      : b0                     (first-layer bias)
      cols 1..4  : bh[0..3]               (hidden biases)
      col 5      : bo padded to 64 rows   (rows 0..2 valid)
      cols 6..7  : w0[:, 0], w0[:, 1]     (first-layer weight columns)
    """
    b0 = small_ref[:, 0:1]                      # [64, 1]
    bo = small_ref[0:OUT_DIM, 5:6]              # [3, 1]
    w0c0 = small_ref[:, 6:7]                    # [64, 1]
    w0c1 = small_ref[:, 7:8]                    # [64, 1]
    wo = wo_ref[...]                            # [3, 64] f32

    # Static unroll of the chunk loop (== lax.fori_loop(..., unroll=True) after
    # tracing, with static slice offsets). Live activation stays [64, chunk]
    # per chunk; per-grid-step overhead is amortized over num_chunks chunks.
    for c in range(num_chunks):
        start = c * chunk
        xc = x_ref[:, pl.ds(start, chunk)]      # [2, chunk]

        # First layer (K=2): two VPU broadcast FMAs instead of an MXU dot.
        h = jnp.tanh(w0c0 * xc[0:1, :] + w0c1 * xc[1:2, :] + b0)   # [64, chunk] f32

        # Hidden layers: bf16 MXU operands (cuts f32 multi-pass emulation),
        # f32 accumulation, f32 bias-add + f32 tanh (v5e-safe).
        for l in range(N_HIDDEN_LAYERS):
            z = jnp.dot(wh_ref[l], h.astype(jnp.bfloat16),
                        preferred_element_type=jnp.float32)        # [64, chunk]
            h = jnp.tanh(z + small_ref[:, 1 + l:2 + l])

        # Output head (3 rows), kept in f32; single lane-dense store per chunk.
        out_ref[:, pl.ds(start, chunk)] = (
            jnp.dot(wo, h, preferred_element_type=jnp.float32) + bo
        )


def _unpack_weights(lora_weights):
    """Replicates the slicing / view() logic of the PyTorch forward()."""
    w = lora_weights[0]                                   # flat [17027]
    w0 = w[:IN_DIM * HID].reshape(HID, IN_DIM)            # [64, 2]
    b0 = w[IN_DIM * HID:IN_DIM * HID + HID].reshape(HID, 1)
    i = IN_DIM * HID + HID                                # 192
    wh_list, bh_list = [], []
    for _ in range(N_HIDDEN_LAYERS):
        wh_list.append(w[i:i + HID * HID].reshape(HID, HID))
        bh_list.append(w[i + HID * HID:i + HID * HID + HID])
        i += HID * (HID + 1)
    wo = w[i:i + HID * OUT_DIM].reshape(OUT_DIM, HID)     # [3, 64]
    bo = w[i + HID * OUT_DIM:i + HID * OUT_DIM + OUT_DIM].reshape(OUT_DIM, 1)
    wh = jnp.stack(wh_list, 0)                            # [4, 64, 64]
    bh = jnp.stack(bh_list, 0)                            # [4, 64]
    return w0, b0, wh, bh, wo, bo


def _round_up(a, m):
    return ((a + m - 1) // m) * m


def _choose_tiling(n, *, chunk_lanes=512, max_chunks_per_block=4):
    # Clamp the lane chunk for small batches.
    chunk = min(chunk_lanes, _round_up(max(n, 1), 128))
    total_chunks = pl.cdiv(n, chunk)
    # Chunks per grid block: amortize per-step overhead, but keep >= 2 grid
    # blocks whenever there is more than one chunk of work so the "parallel"
    # grid axis can be sharded across v7x's two TensorCores.
    cpb = min(max_chunks_per_block, total_chunks)
    if total_chunks > 1:
        cpb = min(cpb, max(1, pl.cdiv(total_chunks, 2)))
    n_blocks = pl.cdiv(total_chunks, cpb)
    return chunk, cpb, n_blocks


def main_model_dnn_forward(original_weights, lora_weights, x, *,
                           chunk_lanes=512, max_chunks_per_block=4):
    """Pallas equivalent of Main_Model_DNN.forward. `original_weights` unused."""
    del original_weights  # unused in the reference forward()
    x = x.astype(jnp.float32)
    n = x.shape[0]
    w0, b0, wh, bh, wo, bo = _unpack_weights(lora_weights.astype(jnp.float32))

    # Merge all tiny per-layer vectors (+ the [64,2] first-layer weight) into a
    # single [64, 8] operand -> one small padded VMEM tile / DMA instead of five.
    small = jnp.zeros((HID, 8), jnp.float32)
    small = small.at[:, 0:1].set(b0)
    small = small.at[:, 1:1 + N_HIDDEN_LAYERS].set(bh.T)
    small = small.at[:OUT_DIM, 5:6].set(bo)
    small = small.at[:, 6:8].set(w0)

    wh_bf16 = wh.astype(jnp.bfloat16)   # bf16 MXU operands; accumulation stays f32

    chunk, cpb, n_blocks = _choose_tiling(
        n, chunk_lanes=chunk_lanes, max_chunks_per_block=max_chunks_per_block)
    blk = cpb * chunk
    n_pad = n_blocks * blk

    # Padded columns compute tanh(bias) garbage that is trimmed below.
    xT = jnp.pad(x.T, ((0, 0), (0, n_pad - n)))           # [2, n_pad]

    flops = 2 * n_pad * (IN_DIM * HID + N_HIDDEN_LAYERS * HID * HID + HID * OUT_DIM)
    transcendentals = (N_HIDDEN_LAYERS + 1) * HID * n_pad
    bytes_accessed = ((IN_DIM + OUT_DIM) * n_pad * 4
                      + int(wh_bf16.size) * 2 + int(small.size + wo.size) * 4)

    kernel = functools.partial(_mlp_kernel, chunk=chunk, num_chunks=cpb)

    out = pl.pallas_call(
        kernel,
        out_shape=jax.ShapeDtypeStruct((OUT_DIM, n_pad), jnp.float32),
        grid=(n_blocks,),
        in_specs=[
            pl.BlockSpec((IN_DIM, blk), lambda i: (0, i)),               # xT tile (pipelined)
            pl.BlockSpec((HID, 8), lambda i: (0, 0)),                    # merged biases + w0
            pl.BlockSpec((N_HIDDEN_LAYERS, HID, HID), lambda i: (0, 0, 0)),  # hidden weights (bf16)
            pl.BlockSpec((OUT_DIM, HID), lambda i: (0, 0)),              # output head weight
        ],
        out_specs=pl.BlockSpec((OUT_DIM, blk), lambda i: (0, i)),        # lane-dense output
        compiler_params=pltpu.CompilerParams(
            dimension_semantics=("parallel",),                           # megacore on v7x
        ),
        cost_estimate=pl.CostEstimate(
            flops=flops,
            transcendentals=transcendentals,
            bytes_accessed=bytes_accessed,
        ),
    )(xT, small, wh_bf16, wo)

    out = out[:, :n]                                      # trim padding -> [3, N]
    u = out[0:1, :].T                                     # [N, 1]
    v = out[1:2, :].T
    p = out[2:3, :].T
    return u, v, p


def _reference_forward(lora_weights, x, *, bf16_dot=False):
    """Pure-JAX mirror of the PyTorch forward. With bf16_dot=True it applies the
    same bf16-at-the-dot casts the kernel uses (f32 accumulation)."""
    w = lora_weights[0].astype(jnp.float32)
    x = x.astype(jnp.float32)
    h = jnp.tanh(jnp.dot(x, w[:128].reshape(64, 2).T,
                         precision=jax.lax.Precision.HIGHEST) + w[128:192])
    i = 192
    for _ in range(4):
        wl = w[i:i + 4096].reshape(64, 64)
        bl = w[i + 4096:i + 4096 + 64]
        if bf16_dot:
            z = jnp.dot(h.astype(jnp.bfloat16), wl.astype(jnp.bfloat16).T,
                        preferred_element_type=jnp.float32)
        else:
            z = jnp.dot(h, wl.T, precision=jax.lax.Precision.HIGHEST)
        h = jnp.tanh(z + bl)
        i += 64 * 65
    wl = w[i:i + 192].reshape(3, 64)
    bl = w[i + 192:i + 195]
    h = jnp.dot(h, wl.T, precision=jax.lax.Precision.HIGHEST) + bl
    return h[:, 0:1], h[:, 1:2], h[:, 2:3]


if __name__ == "__main__":
    key = jax.random.PRNGKey(0)
    k1, k2, k3, k4 = jax.random.split(key, 4)

    lora_weights = jax.random.normal(k2, (1, TOTAL_PARAMS), jnp.float32) * 0.1
    original_weights = jax.random.normal(k3, (1, TOTAL_PARAMS), jnp.float32)  # unused

    # Small batch (clamped single-block path) and a larger batch (multi-chunk
    # blocks, 2-block grid, padding trim).
    for n, kx in ((8, k1), (1600, k4)):
        x = jax.random.uniform(kx, (n, 2), jnp.float32, minval=-0.5, maxval=1.0)
        u, v, p = main_model_dnn_forward(original_weights, lora_weights, x)
        jax.block_until_ready((u, v, p))
        assert u.shape == (n, 1) and v.shape == (n, 1) and p.shape == (n, 1)

        # Tight check against a reference using the same bf16-at-the-dot casts.
        u_m, v_m, p_m = _reference_forward(lora_weights, x, bf16_dot=True)
        for got, ref in ((u, u_m), (v, v_m), (p, p_m)):
            assert jnp.allclose(got, ref, atol=5e-3, rtol=5e-3)

        # Looser check against the exact f32 PyTorch-equivalent reference
        # (tolerance relaxed deliberately for the bf16 MXU operands).
        u_r, v_r, p_r = _reference_forward(lora_weights, x, bf16_dot=False)
        for got, ref in ((u, u_r), (v, v_r), (p, p_r)):
            assert jnp.allclose(got, ref, atol=3e-2, rtol=3e-2)

    print("KERNEL_OK")
</pallas_src>

<mosaic_0001>
module attributes {stable_mosaic.version = 11 : i64} {
  func.func @_mlp_kernel(%arg0: i32, %arg1: memref<2x128xf32, #tpu.memory_space<vmem>>, %arg2: memref<64x8xf32, #tpu.memory_space<vmem>>, %arg3: memref<4x64x64xbf16, #tpu.memory_space<vmem>>, %arg4: memref<3x64xf32, #tpu.memory_space<vmem>>, %arg5: memref<3x128xf32, #tpu.memory_space<vmem>>) attributes {dimension_semantics = [#tpu.dimension_semantics<parallel>], iteration_bounds = array<i64: 1>, scalar_prefetch = 0 : i64, scratch_operands = 0 : i64, tpu.core_type = #tpu.core_type<tc>, window_params = [{transform_indices = @transform_0, window_bounds = array<i64: 2, 128>}, {pipeline_mode = #tpu.pipeline_mode<synchronous>, transform_indices = @transform_1, window_bounds = array<i64: 64, 8>}, {pipeline_mode = #tpu.pipeline_mode<synchronous>, transform_indices = @transform_2, window_bounds = array<i64: 4, 64, 64>}, {pipeline_mode = #tpu.pipeline_mode<synchronous>, transform_indices = @transform_3, window_bounds = array<i64: 3, 64>}, {transform_indices = @transform_4, window_bounds = array<i64: 3, 128>}]} {
    %c0 = arith.constant 0 : index
    %c0_0 = arith.constant 0 : index
    %0 = vector.load %arg2[%c0, %c0_0] : memref<64x8xf32, #tpu.memory_space<vmem>>, vector<64x1xf32>
    %c0_1 = arith.constant 0 : index
    %c5 = arith.constant 5 : index
    %1 = vector.load %arg2[%c0_1, %c5] : memref<64x8xf32, #tpu.memory_space<vmem>>, vector<3x1xf32>
    %c0_2 = arith.constant 0 : index
    %c6 = arith.constant 6 : index
    %2 = vector.load %arg2[%c0_2, %c6] : memref<64x8xf32, #tpu.memory_space<vmem>>, vector<64x1xf32>
    %c0_3 = arith.constant 0 : index
    %c7 = arith.constant 7 : index
    %3 = vector.load %arg2[%c0_3, %c7] : memref<64x8xf32, #tpu.memory_space<vmem>>, vector<64x1xf32>
    %c0_4 = arith.constant 0 : index
    %c0_5 = arith.constant 0 : index
    %4 = vector.load %arg4[%c0_4, %c0_5] : memref<3x64xf32, #tpu.memory_space<vmem>>, vector<3x64xf32>
    %c0_6 = arith.constant 0 : index
    %c0_7 = arith.constant 0 : index
    %5 = vector.load %arg1[%c0_6, %c0_7] : memref<2x128xf32, #tpu.memory_space<vmem>>, vector<2x128xf32>
    %6 = vector.extract_strided_slice %5 {offsets = [0, 0], sizes = [1, 128], strides = [1, 1]} : vector<2x128xf32> to vector<1x128xf32>
    %7 = vector.broadcast %2 : vector<64x1xf32> to vector<64x128xf32>
    %8 = vector.broadcast %6 : vector<1x128xf32> to vector<64x128xf32>
    %9 = arith.mulf %7, %8 : vector<64x128xf32>
    %10 = vector.extract_strided_slice %5 {offsets = [1, 0], sizes = [1, 128], strides = [1, 1]} : vector<2x128xf32> to vector<1x128xf32>
    %11 = vector.broadcast %3 : vector<64x1xf32> to vector<64x128xf32>
    %12 = vector.broadcast %10 : vector<1x128xf32> to vector<64x128xf32>
    %13 = arith.mulf %11, %12 : vector<64x128xf32>
    %14 = arith.addf %9, %13 : vector<64x128xf32>
    %15 = vector.broadcast %0 : vector<64x1xf32> to vector<64x128xf32>
    %16 = arith.addf %14, %15 : vector<64x128xf32>
    %17 = math.tanh %16 : vector<64x128xf32>
    %c0_8 = arith.constant 0 : index
    %c0_9 = arith.constant 0 : index
    %c0_10 = arith.constant 0 : index
    %18 = vector.load %arg3[%c0_8, %c0_9, %c0_10] : memref<4x64x64xbf16, #tpu.memory_space<vmem>>, vector<1x64x64xbf16>
    %19 = vector.shape_cast %18 : vector<1x64x64xbf16> to vector<64x64xbf16>
    %20 = arith.truncf %17 : vector<64x128xf32> to vector<64x128xbf16>
    %cst = arith.constant dense<0.000000e+00> : vector<64x128xf32>
    %21 = tpu.matmul %19, %20, %cst {dimension_numbers = #tpu.dot_dimension_numbers<[1], [0], [0], [1], [0, 0, 1, 1], [], []>} : vector<64x64xbf16>, vector<64x128xbf16>, vector<64x128xf32> -> vector<64x128xf32>
    %c0_11 = arith.constant 0 : index
    %c1 = arith.constant 1 : index
    %22 = vector.load %arg2[%c0_11, %c1] : memref<64x8xf32, #tpu.memory_space<vmem>>, vector<64x1xf32>
    %23 = vector.broadcast %22 : vector<64x1xf32> to vector<64x128xf32>
    %24 = arith.addf %21, %23 : vector<64x128xf32>
    %25 = math.tanh %24 : vector<64x128xf32>
    %c1_12 = arith.constant 1 : index
    %c0_13 = arith.constant 0 : index
    %c0_14 = arith.constant 0 : index
    %26 = vector.load %arg3[%c1_12, %c0_13, %c0_14] : memref<4x64x64xbf16, #tpu.memory_space<vmem>>, vector<1x64x64xbf16>
    %27 = vector.shape_cast %26 : vector<1x64x64xbf16> to vector<64x64xbf16>
    %28 = arith.truncf %25 : vector<64x128xf32> to vector<64x128xbf16>
    %cst_15 = arith.constant dense<0.000000e+00> : vector<64x128xf32>
    %29 = tpu.matmul %27, %28, %cst_15 {dimension_numbers = #tpu.dot_dimension_numbers<[1], [0], [0], [1], [0, 0, 1, 1], [], []>} : vector<64x64xbf16>, vector<64x128xbf16>, vector<64x128xf32> -> vector<64x128xf32>
    %c0_16 = arith.constant 0 : index
    %c2 = arith.constant 2 : index
    %30 = vector.load %arg2[%c0_16, %c2] : memref<64x8xf32, #tpu.memory_space<vmem>>, vector<64x1xf32>
    %31 = vector.broadcast %30 : vector<64x1xf32> to vector<64x128xf32>
    %32 = arith.addf %29, %31 : vector<64x128xf32>
    %33 = math.tanh %32 : vector<64x128xf32>
    %c2_17 = arith.constant 2 : index
    %c0_18 = arith.constant 0 : index
    %c0_19 = arith.constant 0 : index
    %34 = vector.load %arg3[%c2_17, %c0_18, %c0_19] : memref<4x64x64xbf16, #tpu.memory_space<vmem>>, vector<1x64x64xbf16>
    %35 = vector.shape_cast %34 : vector<1x64x64xbf16> to vector<64x64xbf16>
    %36 = arith.truncf %33 : vector<64x128xf32> to vector<64x128xbf16>
    %cst_20 = arith.constant dense<0.000000e+00> : vector<64x128xf32>
    %37 = tpu.matmul %35, %36, %cst_20 {dimension_numbers = #tpu.dot_dimension_numbers<[1], [0], [0], [1], [0, 0, 1, 1], [], []>} : vector<64x64xbf16>, vector<64x128xbf16>, vector<64x128xf32> -> vector<64x128xf32>
    %c0_21 = arith.constant 0 : index
    %c3 = arith.constant 3 : index
    %38 = vector.load %arg2[%c0_21, %c3] : memref<64x8xf32, #tpu.memory_space<vmem>>, vector<64x1xf32>
    %39 = vector.broadcast %38 : vector<64x1xf32> to vector<64x128xf32>
    %40 = arith.addf %37, %39 : vector<64x128xf32>
    %41 = math.tanh %40 : vector<64x128xf32>
    %c3_22 = arith.constant 3 : index
    %c0_23 = arith.constant 0 : index
    %c0_24 = arith.constant 0 : index
    %42 = vector.load %arg3[%c3_22, %c0_23, %c0_24] : memref<4x64x64xbf16, #tpu.memory_space<vmem>>, vector<1x64x64xbf16>
    %43 = vector.shape_cast %42 : vector<1x64x64xbf16> to vector<64x64xbf16>
    %44 = arith.truncf %41 : vector<64x128xf32> to vector<64x128xbf16>
    %cst_25 = arith.constant dense<0.000000e+00> : vector<64x128xf32>
    %45 = tpu.matmul %43, %44, %cst_25 {dimension_numbers = #tpu.dot_dimension_numbers<[1], [0], [0], [1], [0, 0, 1, 1], [], []>} : vector<64x64xbf16>, vector<64x128xbf16>, vector<64x128xf32> -> vector<64x128xf32>
    %c0_26 = arith.constant 0 : index
    %c4 = arith.constant 4 : index
    %46 = vector.load %arg2[%c0_26, %c4] : memref<64x8xf32, #tpu.memory_space<vmem>>, vector<64x1xf32>
    %47 = vector.broadcast %46 : vector<64x1xf32> to vector<64x128xf32>
    %48 = arith.addf %45, %47 : vector<64x128xf32>
    %49 = math.tanh %48 : vector<64x128xf32>
    %cst_27 = arith.constant dense<0.000000e+00> : vector<3x128xf32>
    %50 = tpu.matmul %4, %49, %cst_27 {dimension_numbers = #tpu.dot_dimension_numbers<[1], [0], [0], [1], [0, 0, 1, 1], [], []>} : vector<3x64xf32>, vector<64x128xf32>, vector<3x128xf32> -> vector<3x128xf32>
    %51 = vector.broadcast %1 : vector<3x1xf32> to vector<3x128xf32>
    %52 = arith.addf %50, %51 : vector<3x128xf32>
    %c0_28 = arith.constant 0 : index
    %c0_29 = arith.constant 0 : index
    %53 = vector.load %arg5[%c0_28, %c0_29] : memref<3x128xf32, #tpu.memory_space<vmem>>, vector<3x128xf32>
    tpu.vector_store %arg5[%c0_28, %c0_29], %52 {strides = array<i32>} : memref<3x128xf32, #tpu.memory_space<vmem>>, vector<3x128xf32>,
    return
  }
  func.func @transform_0(%arg0: i32) -> (i32, i32) {
    %c0_i32 = arith.constant 0 : i32
    %c0_i32_0 = arith.constant 0 : i32
    return %c0_i32, %arg0 : i32, i32
  }
  func.func @transform_1(%arg0: i32) -> (i32, i32) {
    %c0_i32 = arith.constant 0 : i32
    %c0_i32_0 = arith.constant 0 : i32
    %c0_i32_1 = arith.constant 0 : i32
    return %c0_i32, %c0_i32_0 : i32, i32
  }
  func.func @transform_2(%arg0: i32) -> (i32, i32, i32) {
    %c0_i32 = arith.constant 0 : i32
    %c0_i32_0 = arith.constant 0 : i32
    %c0_i32_1 = arith.constant 0 : i32
    %c0_i32_2 = arith.constant 0 : i32
    return %c0_i32, %c0_i32_0, %c0_i32_1 : i32, i32, i32
  }
  func.func @transform_3(%arg0: i32) -> (i32, i32) {
    %c0_i32 = arith.constant 0 : i32
    %c0_i32_0 = arith.constant 0 : i32
    %c0_i32_1 = arith.constant 0 : i32
    return %c0_i32, %c0_i32_0 : i32, i32
  }
  func.func @transform_4(%arg0: i32) -> (i32, i32) {
    %c0_i32 = arith.constant 0 : i32
    %c0_i32_0 = arith.constant 0 : i32
    return %c0_i32, %arg0 : i32, i32
  }
}

</mosaic_0001>

<llo_original>
// kernel: tpu_custom_call.1
$region0: #{tpu_custom_call.1}
  #allocation0 [shape = 'u32[]', space=smem, size = 0x4, offset = 0x4, fixed_abs, tag = 'smem constant byte address 0x4 - core index']
  #allocation1 [shape = 'u32[144,128]{1,0:T(1,128)}', space=vmem, size = 0x12000, scoped, tag = 'internal scratch']
  %s0 = inlined_call_operand.vmem [shape: f32[2,128], index: 0, kind: input, shape index: {}]
  %s1 = inlined_call_operand.vmem [shape: f32[64,8], index: 1, kind: input, shape index: {}]
  %s2 = inlined_call_operand.hbm [shape: bf16[4,64,64], index: 2, kind: input, shape index: {}]
  %s3 = inlined_call_operand.vmem [shape: f32[3,64], index: 3, kind: input, shape index: {}]
  %s4 = inlined_call_operand.hbm [shape: f32[3,128], index: 4, kind: output, shape index: {}]
  %s5 = sld [smem:[#allocation0]]
  $region30: #{tpu_custom_call.1} parent=0
    _
  %s7 = ssub.s32 1, %s5
  %s8 = scalar_select 0, %s7, %s5
  $region1: #{tpu_custom_call.1} parent=0
    #allocation2 [shape = 'u8[65536]{0}', space=vmem, size = 0x10000, scoped, tag = 'input window, operand 2, single buffered']
    #allocation3 [shape = 's32[1]{0}', space=sflag, size = 0x4, scoped, tag = 'scoped memory for tpu_custom_call.1']
    #allocation4 [shape = 's32[1]{0}', space=sflag, size = 0x4, scoped, tag = 'scoped memory for tpu_custom_call.1']
    #allocation5 [shape = 'u8[2048]{0}', space=vmem, size = 0x800, scoped, tag = 'output window, operand 0, single buffered']
    %9 = vsyncpa [#allocation3], 0
    %10 = vsyncpa [#allocation4], 0
    // Predicated region
    $region2: #{tpu_custom_call.1} parent=1 // pred_check
      _
    $region3: #{tpu_custom_call.1} parent=1 // pred_check_branch
      %12 = sbr.rel (0) target = $region5
    $region4: #{tpu_custom_call.1} parent=1 // pred_region
      _
    $region5: #{tpu_custom_call.1} parent=1 // pred_fallthru
      _
    // Predicated region
    $region6: #{tpu_custom_call.1} parent=1 // pred_check
      _
    $region7: #{tpu_custom_call.1} parent=1 // pred_check_branch
      %14 = sbr.rel (0) target = $region9
    $region8: #{tpu_custom_call.1} parent=1 // pred_region
      _
    $region9: #{tpu_custom_call.1} parent=1 // pred_fallthru
      _
    // Predicated region
    $region10: #{tpu_custom_call.1} parent=1 // pred_check
      _
    $region11: #{tpu_custom_call.1} parent=1 // pred_check_branch
      %16 = sbr.rel (0) target = $region13
    $region12: #{tpu_custom_call.1} parent=1 // pred_region
      %s18 = ssub.s32 2048, 2048
      %19 = vsyncadd [#allocation3], %s18
      %s20 = sshll.u32 [#allocation2], 4
      %s21 = int_to_ptr.vmem [resolvable:$true] %s20
      %26 = dma.hbm_to_vmem [thread:$0]  %s2, 2048, %s21, [#allocation3], 64, 64, 4
    $region13: #{tpu_custom_call.1} parent=1 // pred_fallthru
      _
    // Predicated region
    $region14: #{tpu_custom_call.1} parent=1 // pred_check
      _
    $region15: #{tpu_custom_call.1} parent=1 // pred_check_branch
      %28 = sbr.rel (0) target = $region17
    $region16: #{tpu_custom_call.1} parent=1 // pred_region
      _
    $region17: #{tpu_custom_call.1} parent=1 // pred_fallthru
      _
    // Predicated region
    $region18: #{tpu_custom_call.1} parent=1 // pred_check
      _
    $region19: #{tpu_custom_call.1} parent=1 // pred_check_branch
      %30 = sbr.rel (0) target = $region21
    $region20: #{tpu_custom_call.1} parent=1 // pred_region
      %31 = dma.done [#allocation3], 2048
    $region21: #{tpu_custom_call.1} parent=1 // pred_fallthru
      _
    %v33 = vld [vmem:[%s1] sm:$0xff]
    %v34 = vld [vmem:[%s1 + $0x8] sm:$0xff]
    %v35 = vld [vmem:[%s1 + $0x10] sm:$0xff]
    %v36 = vld [vmem:[%s1 + $0x18] sm:$0xff]
    %v37 = vld [vmem:[%s1 + $0x20] sm:$0xff]
    %v38 = vld [vmem:[%s1 + $0x28] sm:$0xff]
    %v39 = vld [vmem:[%s1 + $0x30] sm:$0xff]
    %v40 = vld [vmem:[%s1 + $0x38] sm:$0xff]
    %v41 = vld [vmem:[%s1] sm:$0x7]
    %v42 = vld [vmem:[%s3] sm:$0x7]
    %v43 = vld [vmem:[%s0] sm:$0x3]
    %45 = vset.pattern.permute.xlu0 6
    %46 = vperm.xlu0 %45, %v33
    %v47 = vpop.permute.xlu0 %46
    %50 = vset.pattern.permute.xlu0 6
    %51 = vperm.xlu0 %50, %v34
    %v52 = vpop.permute.xlu0 %51
    %55 = vset.pattern.permute.xlu0 6
    %56 = vperm.xlu0 %55, %v35
    %v57 = vpop.permute.xlu0 %56
    %60 = vset.pattern.permute.xlu0 6
    %61 = vperm.xlu0 %60, %v36
    %v62 = vpop.permute.xlu0 %61
    %65 = vset.pattern.permute.xlu0 6
    %66 = vperm.xlu0 %65, %v37
    %v67 = vpop.permute.xlu0 %66
    %70 = vset.pattern.permute.xlu0 6
    %71 = vperm.xlu0 %70, %v38
    %v72 = vpop.permute.xlu0 %71
    %75 = vset.pattern.permute.xlu0 6
    %76 = vperm.xlu0 %75, %v39
    %v77 = vpop.permute.xlu0 %76
    %80 = vset.pattern.permute.xlu0 6
    %81 = vperm.xlu0 %80, %v40
    %v82 = vpop.permute.xlu0 %81
    %v84 = vlaneseq
    %v85 = vshrl.u32 %v84, 7
    %v86 = vsub.s32 0, %v85
    %v87 = vrot.slane %v43, %v86
    %v88 = vmul.f32 %v47, %v87
    %v89 = vmul.f32 %v52, %v87
    %v90 = vmul.f32 %v57, %v87
    %v91 = vmul.f32 %v62, %v87
    %v92 = vmul.f32 %v67, %v87
    %v93 = vmul.f32 %v72, %v87
    %v94 = vmul.f32 %v77, %v87
    %v95 = vmul.f32 %v82, %v87
    %96 = vset.pattern.permute.xlu0 7
    %97 = vperm.xlu0 %96, %v33
    %v98 = vpop.permute.xlu0 %97
    %100 = vset.pattern.permute.xlu0 7
    %101 = vperm.xlu0 %100, %v34
    %v102 = vpop.permute.xlu0 %101
    %104 = vset.pattern.permute.xlu0 7
    %105 = vperm.xlu0 %104, %v35
    %v106 = vpop.permute.xlu0 %105
    %108 = vset.pattern.permute.xlu0 7
    %109 = vperm.xlu0 %108, %v36
    %v110 = vpop.permute.xlu0 %109
    %112 = vset.pattern.permute.xlu0 7
    %113 = vperm.xlu0 %112, %v37
    %v114 = vpop.permute.xlu0 %113
    %116 = vset.pattern.permute.xlu0 7
    %117 = vperm.xlu0 %116, %v38
    %v118 = vpop.permute.xlu0 %117
    %120 = vset.pattern.permute.xlu0 7
    %121 = vperm.xlu0 %120, %v39
    %v122 = vpop.permute.xlu0 %121
    %124 = vset.pattern.permute.xlu0 7
    %125 = vperm.xlu0 %124, %v40
    %v126 = vpop.permute.xlu0 %125
    %v128 = vlaneseq
    %v129 = vshrl.u32 %v128, 7
    %v130 = vsub.s32 1, %v129
    %v131 = vrot.slane %v43, %v130
    %v132 = vmul.f32 %v98, %v131
    %v133 = vmul.f32 %v102, %v131
    %v134 = vmul.f32 %v106, %v131
    %v135 = vmul.f32 %v110, %v131
    %v136 = vmul.f32 %v114, %v131
    %v137 = vmul.f32 %v118, %v131
    %v138 = vmul.f32 %v122, %v131
    %v139 = vmul.f32 %v126, %v131
    %v140 = vadd.f32 %v88, %v132
    %v141 = vadd.f32 %v89, %v133
    %v142 = vadd.f32 %v90, %v134
    %v143 = vadd.f32 %v91, %v135
    %v144 = vadd.f32 %v92, %v136
    %v145 = vadd.f32 %v93, %v137
    %v146 = vadd.f32 %v94, %v138
    %v147 = vadd.f32 %v95, %v139
    %148 = vset.pattern.permute.xlu0 0
    %149 = vperm.xlu0 %148, %v33
    %v150 = vpop.permute.xlu0 %149
    %152 = vset.pattern.permute.xlu0 0
    %153 = vperm.xlu0 %152, %v34
    %v154 = vpop.permute.xlu0 %153
    %156 = vset.pattern.permute.xlu0 0
    %157 = vperm.xlu0 %156, %v35
    %v158 = vpop.permute.xlu0 %157
    %160 = vset.pattern.permute.xlu0 0
    %161 = vperm.xlu0 %160, %v36
    %v162 = vpop.permute.xlu0 %161
    %164 = vset.pattern.permute.xlu0 0
    %165 = vperm.xlu0 %164, %v37
    %v166 = vpop.permute.xlu0 %165
    %168 = vset.pattern.permute.xlu0 0
    %169 = vperm.xlu0 %168, %v38
    %v170 = vpop.permute.xlu0 %169
    %172 = vset.pattern.permute.xlu0 0
    %173 = vperm.xlu0 %172, %v39
    %v174 = vpop.permute.xlu0 %173
    %176 = vset.pattern.permute.xlu0 0
    %177 = vperm.xlu0 %176, %v40
    %v178 = vpop.permute.xlu0 %177
    %v180 = vadd.f32 %v140, %v150
    %v181 = vadd.f32 %v141, %v154
    %v182 = vadd.f32 %v142, %v158
    %v183 = vadd.f32 %v143, %v162
    %v184 = vadd.f32 %v144, %v166
    %v185 = vadd.f32 %v145, %v170
    %v186 = vadd.f32 %v146, %v174
    %v187 = vadd.f32 %v147, %v178
    %v188 = vtanh.pop %v180
    %v189 = vtanh.pop %v181
    %v190 = vtanh.pop %v182
    %v191 = vtanh.pop %v183
    %v192 = vtanh.pop %v184
    %v193 = vtanh.pop %v185
    %v194 = vtanh.pop %v186
    %v195 = vtanh.pop %v187
    %v196 = vld [vmem:[#allocation2] sm:$0xf]
    %v197 = vld [vmem:[#allocation2 + $0x4] sm:$0xf]
    %v198 = vld [vmem:[#allocation2 + $0x8] sm:$0xf]
    %v199 = vld [vmem:[#allocation2 + $0xc] sm:$0xf]
    %v200 = vld [vmem:[#allocation2 + $0x10] sm:$0xf]
    %v201 = vld [vmem:[#allocation2 + $0x14] sm:$0xf]
    %v202 = vld [vmem:[#allocation2 + $0x18] sm:$0xf]
    %v203 = vld [vmem:[#allocation2 + $0x1c] sm:$0xf]
    %v204 = vpack.c.bf16 %v189, %v188
    %v205 = vpack.c.bf16 %v191, %v190
    %v206 = vpack.c.bf16 %v193, %v192
    %v207 = vpack.c.bf16 %v195, %v194
    %208 = vset.pattern.permute.xlu0 1
    %209 = vperm.xlu0 %208, %v33
    %v210 = vpop.permute.xlu0 %209
    %212 = vset.pattern.permute.xlu0 1
    %213 = vperm.xlu0 %212, %v34
    %v214 = vpop.permute.xlu0 %213
    %216 = vset.pattern.permute.xlu0 1
    %217 = vperm.xlu0 %216, %v35
    %v218 = vpop.permute.xlu0 %217
    %220 = vset.pattern.permute.xlu0 1
    %221 = vperm.xlu0 %220, %v36
    %v222 = vpop.permute.xlu0 %221
    %224 = vset.pattern.permute.xlu0 1
    %225 = vperm.xlu0 %224, %v37
    %v226 = vpop.permute.xlu0 %225
    %228 = vset.pattern.permute.xlu0 1
    %229 = vperm.xlu0 %228, %v38
    %v230 = vpop.permute.xlu0 %229
    %232 = vset.pattern.permute.xlu0 1
    %233 = vperm.xlu0 %232, %v39
    %v234 = vpop.permute.xlu0 %233
    %236 = vset.pattern.permute.xlu0 1
    %237 = vperm.xlu0 %236, %v40
    %v238 = vpop.permute.xlu0 %237
    %v248 = vunpack.c.l.b16 %v196
    %v249 = vunpack.c.l.b16 %v197
    %v250 = vunpack.c.l.b16 %v198
    %v251 = vunpack.c.l.b16 %v199
    %v252 = vunpack.c.l.b16 %v200
    %v253 = vunpack.c.l.b16 %v201
    %v254 = vunpack.c.l.b16 %v202
    %v255 = vunpack.c.l.b16 %v203
    %v256 = vpack.c.b16 %v249, %v248
    %v257 = vpack.c.b16 %v251, %v250
    %v258 = vpack.c.b16 %v253, %v252
    %v259 = vpack.c.b16 %v255, %v254
    %vm260 = vcmask 523264
    %v262 = vsel %vm260, %v256, 0
    %v265 = vsel %vm260, %v257, 0
    %v268 = vsel %vm260, %v258, 0
    %v271 = vsel %vm260, %v259, 0
    %273 = vmatprep.subr.bf16.mxu0 0
    %274 = vmatpush1.bf16.msra.mxu0 %v204
    %275 = vmatprep.subr.bf16.mxu0 0
    %276 = vmatpush1.bf16.msra.mxu0 %v205
    %277 = vmatprep.subr.bf16.mxu0 0
    %278 = vmatpush1.bf16.msra.mxu0 %v206
    %279 = vmatprep.subr.bf16.mxu0 0
    %280 = vmatpush1.bf16.msra.mxu0 %v207
    %281 = vmatprep.subr.bf16.mxu0 0
    %282 = vmatpush1.bf16.msra.mxu0 0
    %283 = vmatprep.subr.bf16.mxu0 0
    %284 = vmatpush1.bf16.msra.mxu0 0
    %285 = vmatprep.subr.bf16.mxu0 0
    %286 = vmatpush1.bf16.msra.mxu0 0
    %287 = vmatprep.subr.bf16.mxu0 0
    %288 = vmatpush1.bf16.msra.mxu0 0
    %289 = vmatprep.subr.bf16.mxu0 0
    %290 = vmatpush1.bf16.msra.mxu0 0
    %291 = vmatprep.subr.bf16.mxu0 0
    %292 = vmatpush1.bf16.msra.mxu0 0
    %293 = vmatprep.subr.bf16.mxu0 0
    %294 = vmatpush1.bf16.msra.mxu0 0
    %295 = vmatprep.subr.bf16.mxu0 0
    %296 = vmatpush1.bf16.msra.mxu0 0
    %297 = vmatprep.subr.bf16.mxu0 0
    %298 = vmatpush1.bf16.msra.mxu0 0
    %299 = vmatprep.subr.bf16.mxu0 0
    %300 = vmatpush1.bf16.msra.mxu0 0
    %301 = vmatprep.subr.bf16.mxu0 0
    %302 = vmatpush1.bf16.msra.mxu0 0
    %303 = vmatprep.subr.bf16.mxu0 0
    %304 = vmatpush1.bf16.msra.mxu0 0
    %305 = vmatprep.mubr.bf16.mxu0 0
    %306 = vmatmul.mubr.bf16.gmra.mrb[0].mxu0 %v262
    %v307 = vpop.f32.mrb[0].mxu0
    %v308 = vadd.f32 %v210, %v307
    %v309 = vpop.f32.mrb[0].mxu0
    %v310 = vpop.f32.mrb[0].mxu0
    %v311 = vadd.f32 %v214, %v310
    %v312 = vpop.f32.mrb[0].mxu0
    %313 = vmatprep.mubr.bf16.mxu0 0
    %314 = vmatmul.mubr.bf16.gmra.mrb[0].mxu0 %v265
    %v315 = vpop.f32.mrb[0].mxu0
    %v316 = vadd.f32 %v218, %v315
    %v317 = vpop.f32.mrb[0].mxu0
    %v318 = vpop.f32.mrb[0].mxu0
    %v319 = vadd.f32 %v222, %v318
    %v320 = vpop.f32.mrb[0].mxu0
    %321 = vmatprep.mubr.bf16.mxu0 0
    %322 = vmatmul.mubr.bf16.gmra.mrb[0].mxu0 %v268
    %v323 = vpop.f32.mrb[0].mxu0
    %v324 = vadd.f32 %v226, %v323
    %v325 = vpop.f32.mrb[0].mxu0
    %v326 = vpop.f32.mrb[0].mxu0
    %v327 = vadd.f32 %v230, %v326
    %v328 = vpop.f32.mrb[0].mxu0
    %329 = vmatprep.mubr.bf16.mxu0 0
    %330 = vmatmul.mubr.bf16.gmra.mrb[0].mxu0 %v271
    %v331 = vpop.f32.mrb[0].mxu0
    %v332 = vadd.f32 %v234, %v331
    %v333 = vpop.f32.mrb[0].mxu0
    %v334 = vpop.f32.mrb[0].mxu0
    %v335 = vadd.f32 %v238, %v334
    %v336 = vpop.f32.mrb[0].mxu0
    %337 = vdwg.mxu0
    %v338 = vtanh.pop %v308
    %v339 = vtanh.pop %v311
    %v340 = vtanh.pop %v316
    %v341 = vtanh.pop %v319
    %v342 = vtanh.pop %v324
    %v343 = vtanh.pop %v327
    %v344 = vtanh.pop %v332
    %v345 = vtanh.pop %v335
    %s346 = scalar_lea.vmem [#allocation2], 32
    %v347 = vld [vmem:[%s346] sm:$0xf]
    %v348 = vld [vmem:[%s346 + $0x4] sm:$0xf]
    %v349 = vld [vmem:[%s346 + $0x8] sm:$0xf]
    %v350 = vld [vmem:[%s346 + $0xc] sm:$0xf]
    %v351 = vld [vmem:[%s346 + $0x10] sm:$0xf]
    %v352 = vld [vmem:[%s346 + $0x14] sm:$0xf]
    %v353 = vld [vmem:[%s346 + $0x18] sm:$0xf]
    %v354 = vld [vmem:[%s346 + $0x1c] sm:$0xf]
    %v355 = vpack.c.bf16 %v339, %v338
    %v356 = vpack.c.bf16 %v341, %v340
    %v357 = vpack.c.bf16 %v343, %v342
    %v358 = vpack.c.bf16 %v345, %v344
    %359 = vset.pattern.permute.xlu0 2
    %360 = vperm.xlu0 %359, %v33
    %v361 = vpop.permute.xlu0 %360
    %363 = vset.pattern.permute.xlu0 2
    %364 = vperm.xlu0 %363, %v34
    %v365 = vpop.permute.xlu0 %364
    %367 = vset.pattern.permute.xlu0 2
    %368 = vperm.xlu0 %367, %v35
    %v369 = vpop.permute.xlu0 %368
    %371 = vset.pattern.permute.xlu0 2
    %372 = vperm.xlu0 %371, %v36
    %v373 = vpop.permute.xlu0 %372
    %375 = vset.pattern.permute.xlu0 2
    %376 = vperm.xlu0 %375, %v37
    %v377 = vpop.permute.xlu0 %376
    %379 = vset.pattern.permute.xlu0 2
    %380 = vperm.xlu0 %379, %v38
    %v381 = vpop.permute.xlu0 %380
    %383 = vset.pattern.permute.xlu0 2
    %384 = vperm.xlu0 %383, %v39
    %v385 = vpop.permute.xlu0 %384
    %387 = vset.pattern.permute.xlu0 2
    %388 = vperm.xlu0 %387, %v40
    %v389 = vpop.permute.xlu0 %388
    %v399 = vunpack.c.l.b16 %v347
    %v400 = vunpack.c.l.b16 %v348
    %v401 = vunpack.c.l.b16 %v349
    %v402 = vunpack.c.l.b16 %v350
    %v403 = vunpack.c.l.b16 %v351
    %v404 = vunpack.c.l.b16 %v352
    %v405 = vunpack.c.l.b16 %v353
    %v406 = vunpack.c.l.b16 %v354
    %v407 = vpack.c.b16 %v400, %v399
    %v408 = vpack.c.b16 %v402, %v401
    %v409 = vpack.c.b16 %v404, %v403
    %v410 = vpack.c.b16 %v406, %v405
    %v412 = vsel %vm260, %v407, 0
    %v415 = vsel %vm260, %v408, 0
    %v418 = vsel %vm260, %v409, 0
    %v421 = vsel %vm260, %v410, 0
    %423 = vmatprep.subr.bf16.mxu0 0
    %424 = vmatpush1.bf16.msra.mxu0 %v355
    %425 = vmatprep.subr.bf16.mxu0 0
    %426 = vmatpush1.bf16.msra.mxu0 %v356
    %427 = vmatprep.subr.bf16.mxu0 0
    %428 = vmatpush1.bf16.msra.mxu0 %v357
    %429 = vmatprep.subr.bf16.mxu0 0
    %430 = vmatpush1.bf16.msra.mxu0 %v358
    %431 = vmatprep.subr.bf16.mxu0 0
    %432 = vmatpush1.bf16.msra.mxu0 0
    %433 = vmatprep.subr.bf16.mxu0 0
    %434 = vmatpush1.bf16.msra.mxu0 0
    %435 = vmatprep.subr.bf16.mxu0 0
    %436 = vmatpush1.bf16.msra.mxu0 0
    %437 = vmatprep.subr.bf16.mxu0 0
    %438 = vmatpush1.bf16.msra.mxu0 0
    %439 = vmatprep.subr.bf16.mxu0 0
    %440 = vmatpush1.bf16.msra.mxu0 0
    %441 = vmatprep.subr.bf16.mxu0 0
    %442 = vmatpush1.bf16.msra.mxu0 0
    %443 = vmatprep.subr.bf16.mxu0 0
    %444 = vmatpush1.bf16.msra.mxu0 0
    %445 = vmatprep.subr.bf16.mxu0 0
    %446 = vmatpush1.bf16.msra.mxu0 0
    %447 = vmatprep.subr.bf16.mxu0 0
    %448 = vmatpush1.bf16.msra.mxu0 0
    %449 = vmatprep.subr.bf16.mxu0 0
    %450 = vmatpush1.bf16.msra.mxu0 0
    %451 = vmatprep.subr.bf16.mxu0 0
    %452 = vmatpush1.bf16.msra.mxu0 0
    %453 = vmatprep.subr.bf16.mxu0 0
    %454 = vmatpush1.bf16.msra.mxu0 0
    %455 = vmatprep.mubr.bf16.mxu0 0
    %456 = vmatmul.mubr.bf16.gmra.mrb[0].mxu0 %v412
    %v457 = vpop.f32.mrb[0].mxu0
    %v458 = vadd.f32 %v361, %v457
    %v459 = vpop.f32.mrb[0].mxu0
    %v460 = vpop.f32.mrb[0].mxu0
    %v461 = vadd.f32 %v365, %v460
    %v462 = vpop.f32.mrb[0].mxu0
    %463 = vmatprep.mubr.bf16.mxu0 0
    %464 = vmatmul.mubr.bf16.gmra.mrb[0].mxu0 %v415
    %v465 = vpop.f32.mrb[0].mxu0
    %v466 = vadd.f32 %v369, %v465
    %v467 = vpop.f32.mrb[0].mxu0
    %v468 = vpop.f32.mrb[0].mxu0
    %v469 = vadd.f32 %v373, %v468
    %v470 = vpop.f32.mrb[0].mxu0
    %471 = vmatprep.mubr.bf16.mxu0 0
    %472 = vmatmul.mubr.bf16.gmra.mrb[0].mxu0 %v418
    %v473 = vpop.f32.mrb[0].mxu0
    %v474 = vadd.f32 %v377, %v473
    %v475 = vpop.f32.mrb[0].mxu0
    %v476 = vpop.f32.mrb[0].mxu0
    %v477 = vadd.f32 %v381, %v476
    %v478 = vpop.f32.mrb[0].mxu0
    %479 = vmatprep.mubr.bf16.mxu0 0
    %480 = vmatmul.mubr.bf16.gmra.mrb[0].mxu0 %v421
    %v481 = vpop.f32.mrb[0].mxu0
    %v482 = vadd.f32 %v385, %v481
    %v483 = vpop.f32.mrb[0].mxu0
    %v484 = vpop.f32.mrb[0].mxu0
    %v485 = vadd.f32 %v389, %v484
    %v486 = vpop.f32.mrb[0].mxu0
    %487 = vdwg.mxu0
    %v488 = vtanh.pop %v458
    %v489 = vtanh.pop %v461
    %v490 = vtanh.pop %v466
    %v491 = vtanh.pop %v469
    %v492 = vtanh.pop %v474
    %v493 = vtanh.pop %v477
    %v494 = vtanh.pop %v482
    %v495 = vtanh.pop %v485
    %s496 = scalar_lea.vmem [#allocation2], 64
    %v497 = vld [vmem:[%s496] sm:$0xf]
    %v498 = vld [vmem:[%s496 + $0x4] sm:$0xf]
    %v499 = vld [vmem:[%s496 + $0x8] sm:$0xf]
    %v500 = vld [vmem:[%s496 + $0xc] sm:$0xf]
    %v501 = vld [vmem:[%s496 + $0x10] sm:$0xf]
    %v502 = vld [vmem:[%s496 + $0x14] sm:$0xf]
    %v503 = vld [vmem:[%s496 + $0x18] sm:$0xf]
    %v504 = vld [vmem:[%s496 + $0x1c] sm:$0xf]
    %v505 = vpack.c.bf16 %v489, %v488
    %v506 = vpack.c.bf16 %v491, %v490
    %v507 = vpack.c.bf16 %v493, %v492
    %v508 = vpack.c.bf16 %v495, %v494
    %509 = vset.pattern.permute.xlu0 3
    %510 = vperm.xlu0 %509, %v33
    %v511 = vpop.permute.xlu0 %510
    %513 = vset.pattern.permute.xlu0 3
    %514 = vperm.xlu0 %513, %v34
    %v515 = vpop.permute.xlu0 %514
    %517 = vset.pattern.permute.xlu0 3
    %518 = vperm.xlu0 %517, %v35
    %v519 = vpop.permute.xlu0 %518
    %521 = vset.pattern.permute.xlu0 3
    %522 = vperm.xlu0 %521, %v36
    %v523 = vpop.permute.xlu0 %522
    %525 = vset.pattern.permute.xlu0 3
    %526 = vperm.xlu0 %525, %v37
    %v527 = vpop.permute.xlu0 %526
    %529 = vset.pattern.permute.xlu0 3
    %530 = vperm.xlu0 %529, %v38
    %v531 = vpop.permute.xlu0 %530
    %533 = vset.pattern.permute.xlu0 3
    %534 = vperm.xlu0 %533, %v39
    %v535 = vpop.permute.xlu0 %534
    %537 = vset.pattern.permute.xlu0 3
    %538 = vperm.xlu0 %537, %v40
    %v539 = vpop.permute.xlu0 %538
    %v549 = vunpack.c.l.b16 %v497
    %v550 = vunpack.c.l.b16 %v498
    %v551 = vunpack.c.l.b16 %v499
    %v552 = vunpack.c.l.b16 %v500
    %v553 = vunpack.c.l.b16 %v501
    %v554 = vunpack.c.l.b16 %v502
    %v555 = vunpack.c.l.b16 %v503
    %v556 = vunpack.c.l.b16 %v504
    %v557 = vpack.c.b16 %v550, %v549
    %v558 = vpack.c.b16 %v552, %v551
    %v559 = vpack.c.b16 %v554, %v553
    %v560 = vpack.c.b16 %v556, %v555
    %v562 = vsel %vm260, %v557, 0
    %v565 = vsel %vm260, %v558, 0
    %v568 = vsel %vm260, %v559, 0
    %v571 = vsel %vm260, %v560, 0
    %573 = vmatprep.subr.bf16.mxu0 0
    %574 = vmatpush1.bf16.msra.mxu0 %v505
    %575 = vmatprep.subr.bf16.mxu0 0
    %576 = vmatpush1.bf16.msra.mxu0 %v506
    %577 = vmatprep.subr.bf16.mxu0 0
    %578 = vmatpush1.bf16.msra.mxu0 %v507
    %579 = vmatprep.subr.bf16.mxu0 0
    %580 = vmatpush1.bf16.msra.mxu0 %v508
    %581 = vmatprep.subr.bf16.mxu0 0
    %582 = vmatpush1.bf16.msra.mxu0 0
    %583 = vmatprep.subr.bf16.mxu0 0
    %584 = vmatpush1.bf16.msra.mxu0 0
    %585 = vmatprep.subr.bf16.mxu0 0
    %586 = vmatpush1.bf16.msra.mxu0 0
    %587 = vmatprep.subr.bf16.mxu0 0
    %588 = vmatpush1.bf16.msra.mxu0 0
    %589 = vmatprep.subr.bf16.mxu0 0
    %590 = vmatpush1.bf16.msra.mxu0 0
    %591 = vmatprep.subr.bf16.mxu0 0
    %592 = vmatpush1.bf16.msra.mxu0 0
    %593 = vmatprep.subr.bf16.mxu0 0
    %594 = vmatpush1.bf16.msra.mxu0 0
    %595 = vmatprep.subr.bf16.mxu0 0
    %596 = vmatpush1.bf16.msra.mxu0 0
    %597 = vmatprep.subr.bf16.mxu0 0
    %598 = vmatpush1.bf16.msra.mxu0 0
    %599 = vmatprep.subr.bf16.mxu0 0
    %600 = vmatpush1.bf16.msra.mxu0 0
    %601 = vmatprep.subr.bf16.mxu0 0
    %602 = vmatpush1.bf16.msra.mxu0 0
    %603 = vmatprep.subr.bf16.mxu0 0
    %604 = vmatpush1.bf16.msra.mxu0 0
    %605 = vmatprep.mubr.bf16.mxu0 0
    %606 = vmatmul.mubr.bf16.gmra.mrb[0].mxu0 %v562
    %v607 = vpop.f32.mrb[0].mxu0
    %v608 = vadd.f32 %v511, %v607
    %v609 = vpop.f32.mrb[0].mxu0
    %v610 = vpop.f32.mrb[0].mxu0
    %v611 = vadd.f32 %v515, %v610
    %v612 = vpop.f32.mrb[0].mxu0
    %613 = vmatprep.mubr.bf16.mxu0 0
    %614 = vmatmul.mubr.bf16.gmra.mrb[0].mxu0 %v565
    %v615 = vpop.f32.mrb[0].mxu0
    %v616 = vadd.f32 %v519, %v615
    %v617 = vpop.f32.mrb[0].mxu0
    %v618 = vpop.f32.mrb[0].mxu0
    %v619 = vadd.f32 %v523, %v618
    %v620 = vpop.f32.mrb[0].mxu0
    %621 = vmatprep.mubr.bf16.mxu0 0
    %622 = vmatmul.mubr.bf16.gmra.mrb[0].mxu0 %v568
    %v623 = vpop.f32.mrb[0].mxu0
    %v624 = vadd.f32 %v527, %v623
    %v625 = vpop.f32.mrb[0].mxu0
    %v626 = vpop.f32.mrb[0].mxu0
    %v627 = vadd.f32 %v531, %v626
    %v628 = vpop.f32.mrb[0].mxu0
    %629 = vmatprep.mubr.bf16.mxu0 0
    %630 = vmatmul.mubr.bf16.gmra.mrb[0].mxu0 %v571
    %v631 = vpop.f32.mrb[0].mxu0
    %v632 = vadd.f32 %v535, %v631
    %v633 = vpop.f32.mrb[0].mxu0
    %v634 = vpop.f32.mrb[0].mxu0
    %v635 = vadd.f32 %v539, %v634
    %v636 = vpop.f32.mrb[0].mxu0
    %637 = vdwg.mxu0
    %v638 = vtanh.pop %v608
    %v639 = vtanh.pop %v611
    %v640 = vtanh.pop %v616
    %v641 = vtanh.pop %v619
    %v642 = vtanh.pop %v624
    %v643 = vtanh.pop %v627
    %v644 = vtanh.pop %v632
    %v645 = vtanh.pop %v635
    %s646 = scalar_lea.vmem [#allocation2], 96
    %v647 = vld [vmem:[%s646] sm:$0xf]
    %v648 = vld [vmem:[%s646 + $0x4] sm:$0xf]
    %v649 = vld [vmem:[%s646 + $0x8] sm:$0xf]
    %v650 = vld [vmem:[%s646 + $0xc] sm:$0xf]
    %v651 = vld [vmem:[%s646 + $0x10] sm:$0xf]
    %v652 = vld [vmem:[%s646 + $0x14] sm:$0xf]
    %v653 = vld [vmem:[%s646 + $0x18] sm:$0xf]
    %v654 = vld [vmem:[%s646 + $0x1c] sm:$0xf]
    %v655 = vpack.c.bf16 %v639, %v638
    %v656 = vpack.c.bf16 %v641, %v640
    %v657 = vpack.c.bf16 %v643, %v642
    %v658 = vpack.c.bf16 %v645, %v644
    %659 = vset.pattern.permute.xlu0 4
    %660 = vperm.xlu0 %659, %v33
    %v661 = vpop.permute.xlu0 %660
    %663 = vset.pattern.permute.xlu0 4
    %664 = vperm.xlu0 %663, %v34
    %v665 = vpop.permute.xlu0 %664
    %667 = vset.pattern.permute.xlu0 4
    %668 = vperm.xlu0 %667, %v35
    %v669 = vpop.permute.xlu0 %668
    %671 = vset.pattern.permute.xlu0 4
    %672 = vperm.xlu0 %671, %v36
    %v673 = vpop.permute.xlu0 %672
    %675 = vset.pattern.permute.xlu0 4
    %676 = vperm.xlu0 %675, %v37
    %v677 = vpop.permute.xlu0 %676
    %679 = vset.pattern.permute.xlu0 4
    %680 = vperm.xlu0 %679, %v38
    %v681 = vpop.permute.xlu0 %680
    %683 = vset.pattern.permute.xlu0 4
    %684 = vperm.xlu0 %683, %v39
    %v685 = vpop.permute.xlu0 %684
    %687 = vset.pattern.permute.xlu0 4
    %688 = vperm.xlu0 %687, %v40
    %v689 = vpop.permute.xlu0 %688
    %v699 = vunpack.c.l.b16 %v647
    %v700 = vunpack.c.l.b16 %v648
    %v701 = vunpack.c.l.b16 %v649
    %v702 = vunpack.c.l.b16 %v650
    %v703 = vunpack.c.l.b16 %v651
    %v704 = vunpack.c.l.b16 %v652
    %v705 = vunpack.c.l.b16 %v653
    %v706 = vunpack.c.l.b16 %v654
    %v707 = vpack.c.b16 %v700, %v699
    %v708 = vpack.c.b16 %v702, %v701
    %v709 = vpack.c.b16 %v704, %v703
    %v710 = vpack.c.b16 %v706, %v705
    %v712 = vsel %vm260, %v707, 0
    %v715 = vsel %vm260, %v708, 0
    %v718 = vsel %vm260, %v709, 0
    %v721 = vsel %vm260, %v710, 0
    %723 = vmatprep.subr.bf16.mxu0 0
    %724 = vmatpush1.bf16.msra.mxu0 %v655
    %725 = vmatprep.subr.bf16.mxu0 0
    %726 = vmatpush1.bf16.msra.mxu0 %v656
    %727 = vmatprep.subr.bf16.mxu0 0
    %728 = vmatpush1.bf16.msra.mxu0 %v657
    %729 = vmatprep.subr.bf16.mxu0 0
    %730 = vmatpush1.bf16.msra.mxu0 %v658
    %731 = vmatprep.subr.bf16.mxu0 0
    %732 = vmatpush1.bf16.msra.mxu0 0
    %733 = vmatprep.subr.bf16.mxu0 0
    %734 = vmatpush1.bf16.msra.mxu0 0
    %735 = vmatprep.subr.bf16.mxu0 0
    %736 = vmatpush1.bf16.msra.mxu0 0
    %737 = vmatprep.subr.bf16.mxu0 0
    %738 = vmatpush1.bf16.msra.mxu0 0
    %739 = vmatprep.subr.bf16.mxu0 0
    %740 = vmatpush1.bf16.msra.mxu0 0
    %741 = vmatprep.subr.bf16.mxu0 0
    %742 = vmatpush1.bf16.msra.mxu0 0
    %743 = vmatprep.subr.bf16.mxu0 0
    %744 = vmatpush1.bf16.msra.mxu0 0
    %745 = vmatprep.subr.bf16.mxu0 0
    %746 = vmatpush1.bf16.msra.mxu0 0
    %747 = vmatprep.subr.bf16.mxu0 0
    %748 = vmatpush1.bf16.msra.mxu0 0
    %749 = vmatprep.subr.bf16.mxu0 0
    %750 = vmatpush1.bf16.msra.mxu0 0
    %751 = vmatprep.subr.bf16.mxu0 0
    %752 = vmatpush1.bf16.msra.mxu0 0
    %753 = vmatprep.subr.bf16.mxu0 0
    %754 = vmatpush1.bf16.msra.mxu0 0
    %755 = vmatprep.mubr.bf16.mxu0 0
    %756 = vmatmul.mubr.bf16.gmra.mrb[0].mxu0 %v712
    %v757 = vpop.f32.mrb[0].mxu0
    %v758 = vadd.f32 %v661, %v757
    %v759 = vpop.f32.mrb[0].mxu0
    %v760 = vpop.f32.mrb[0].mxu0
    %v761 = vadd.f32 %v665, %v760
    %v762 = vpop.f32.mrb[0].mxu0
    %763 = vmatprep.mubr.bf16.mxu0 0
    %764 = vmatmul.mubr.bf16.gmra.mrb[0].mxu0 %v715
    %v765 = vpop.f32.mrb[0].mxu0
    %v766 = vadd.f32 %v669, %v765
    %v767 = vpop.f32.mrb[0].mxu0
    %v768 = vpop.f32.mrb[0].mxu0
    %v769 = vadd.f32 %v673, %v768
    %v770 = vpop.f32.mrb[0].mxu0
    %771 = vmatprep.mubr.bf16.mxu0 0
    %772 = vmatmul.mubr.bf16.gmra.mrb[0].mxu0 %v718
    %v773 = vpop.f32.mrb[0].mxu0
    %v774 = vadd.f32 %v677, %v773
    %v775 = vpop.f32.mrb[0].mxu0
    %v776 = vpop.f32.mrb[0].mxu0
    %v777 = vadd.f32 %v681, %v776
    %v778 = vpop.f32.mrb[0].mxu0
    %779 = vmatprep.mubr.bf16.mxu0 0
    %780 = vmatmul.mubr.bf16.gmra.mrb[0].mxu0 %v721
    %v781 = vpop.f32.mrb[0].mxu0
    %v782 = vadd.f32 %v685, %v781
    %v783 = vpop.f32.mrb[0].mxu0
    %v784 = vpop.f32.mrb[0].mxu0
    %v785 = vadd.f32 %v689, %v784
    %v786 = vpop.f32.mrb[0].mxu0
    %787 = vdwg.mxu0
    %v788 = vtanh.pop %v758
    %v789 = vtanh.pop %v761
    %v790 = vtanh.pop %v766
    %v791 = vtanh.pop %v769
    %v792 = vtanh.pop %v774
    %v793 = vtanh.pop %v777
    %v794 = vtanh.pop %v782
    %v795 = vtanh.pop %v785
    %797 = vset.pattern.permute.xlu0 5
    %798 = vperm.xlu0 %797, %v41
    %v799 = vpop.permute.xlu0 %798
    %v802 = vsel %vm260, %v42, 0
    %804 = vmatprep.subr.mxu0 0.0
    %805 = vmatpush1.msra.mxu0 %v788
    %806 = vmatprep.subr.mxu0 0.0
    %807 = vmatpush1.msra.mxu0 %v789
    %808 = vmatprep.subr.mxu0 0.0
    %809 = vmatpush1.msra.mxu0 %v790
    %810 = vmatprep.subr.mxu0 0.0
    %811 = vmatpush1.msra.mxu0 %v791
    %812 = vmatprep.subr.mxu0 0.0
    %813 = vmatpush1.msra.mxu0 %v792
    %814 = vmatprep.subr.mxu0 0.0
    %815 = vmatpush1.msra.mxu0 %v793
    %816 = vmatprep.subr.mxu0 0.0
    %817 = vmatpush1.msra.mxu0 %v794
    %818 = vmatprep.subr.mxu0 0.0
    %819 = vmatpush1.msra.mxu0 %v795
    %820 = vmatprep.subr.mxu0 0.0
    %821 = vmatpush1.msra.mxu0 0.0
    %822 = vmatprep.subr.mxu0 0.0
    %823 = vmatpush1.msra.mxu0 0.0
    %824 = vmatprep.subr.mxu0 0.0
    %825 = vmatpush1.msra.mxu0 0.0
    %826 = vmatprep.subr.mxu0 0.0
    %827 = vmatpush1.msra.mxu0 0.0
    %828 = vmatprep.subr.mxu0 0.0
    %829 = vmatpush1.msra.mxu0 0.0
    %830 = vmatprep.subr.mxu0 0.0
    %831 = vmatpush1.msra.mxu0 0.0
    %832 = vmatprep.subr.mxu0 0.0
    %833 = vmatpush1.msra.mxu0 0.0
    %834 = vmatprep.subr.mxu0 0.0
    %835 = vmatpush1.msra.mxu0 0.0
    %836 = vmatprep.subr.mxu0 0.0
    %837 = vmatpush1.msra.mxu0 0.0
    %838 = vmatprep.subr.mxu0 0.0
    %839 = vmatpush1.msra.mxu0 0.0
    %840 = vmatprep.subr.mxu0 0.0
    %841 = vmatpush1.msra.mxu0 0.0
    %842 = vmatprep.subr.mxu0 0.0
    %843 = vmatpush1.msra.mxu0 0.0
    %844 = vmatprep.subr.mxu0 0.0
    %845 = vmatpush1.msra.mxu0 0.0
    %846 = vmatprep.subr.mxu0 0.0
    %847 = vmatpush1.msra.mxu0 0.0
    %848 = vmatprep.subr.mxu0 0.0
    %849 = vmatpush1.msra.mxu0 0.0
    %850 = vmatprep.subr.mxu0 0.0
    %851 = vmatpush1.msra.mxu0 0.0
    %852 = vmatprep.subr.mxu0 0.0
    %853 = vmatpush1.msra.mxu0 0.0
    %854 = vmatprep.subr.mxu0 0.0
    %855 = vmatpush1.msra.mxu0 0.0
    %856 = vmatprep.subr.mxu0 0.0
    %857 = vmatpush1.msra.mxu0 0.0
    %858 = vmatprep.subr.mxu0 0.0
    %859 = vmatpush1.msra.mxu0 0.0
    %860 = vmatprep.subr.mxu0 0.0
    %861 = vmatpush1.msra.mxu0 0.0
    %862 = vmatprep.subr.mxu0 0.0
    %863 = vmatpush1.msra.mxu0 0.0
    %864 = vmatprep.subr.mxu0 0.0
    %865 = vmatpush1.msra.mxu0 0.0
    %866 = vmatprep.subr.mxu0 0.0
    %867 = vmatpush1.msra.mxu0 0.0
    %868 = vmatprep.mubr.f32.mxu0 0.0
    %869 = vmatmul.mubr.f32.gmra.mrb[0].mxu0 %v802
    %v870 = vpop.f32.mrb[0].mxu0
    %v871 = vadd.f32 %v799, %v870
    %v872 = vpop.f32.mrb[0].mxu0
    %873 = vdwg.mxu0
    %874 = vst [vmem:[#allocation5] sm:$0x7] %v871
    // Predicated region
    $region22: #{tpu_custom_call.1} parent=1 // pred_check
      _
    $region23: #{tpu_custom_call.1} parent=1 // pred_check_branch
      %876 = sbr.rel (0) target = $region25
    $region24: #{tpu_custom_call.1} parent=1 // pred_region
      %s878 = ssub.s32 64, 64
      %879 = vsyncadd [#allocation4], %s878
      %s881 = sshll.u32 [#allocation5], 4
      %s882 = int_to_ptr.vmem [resolvable:$true] %s881
      %884 = dma.vmem_to_hbm [thread:$0]  %s882, 64, %s4, [#allocation4]
    $region25: #{tpu_custom_call.1} parent=1 // pred_fallthru
      _
    // Predicated region
    $region26: #{tpu_custom_call.1} parent=1 // pred_check
      _
    $region27: #{tpu_custom_call.1} parent=1 // pred_check_branch
      %886 = sbr.rel (0) target = $region29
    $region28: #{tpu_custom_call.1} parent=1 // pred_region
      %887 = dma.done [#allocation4], 64
    $region29: #{tpu_custom_call.1} parent=1 // pred_fallthru
      _
    %888 = vsyncpa [#allocation3], 1
    %889 = vsyncpa [#allocation4], 1

</llo_original>
